<compile_context>
chip_gen: v5e
topology: v5e:2x2
jax: 0.10.0
libtpu: 0.0.40
codegen_flags: <defaults>
</compile_context>

<pallas_src>
import functools

import jax
import jax.numpy as jnp
from jax.experimental import pallas as pl
from jax.experimental.pallas import tpu as pltpu


def gru_cell_kernel(x_ref, h_ref, wxT_ref, whT_ref, brz_ref, bi_ref, bh_ref,
                    o_ref, *, compute_dtype):
    # x_ref  : (tb, input_size)
    # h_ref  : (tb, H)
    # wxT_ref: (input_size, 3H)   columns = [r | z | n] input projections
    # whT_ref: (H, 3H)            columns = [r | z | n] hidden projections
    # brz_ref: (1, 2H)            bias of the fused [x,h] gate Linear
    # bi_ref : (1, H)             candidate input bias  (outside r*(...))
    # bh_ref : (1, H)             candidate hidden bias (inside  r*(...))
    # o_ref  : (tb, H)
    H = o_ref.shape[-1]
    cd = compute_dtype

    x = x_ref[...].astype(cd)
    h = h_ref[...]
    wx = wxT_ref[...].astype(cd)
    wh = whT_ref[...].astype(cd)

    # Two fused MXU dots with f32 accumulation.
    gx = jnp.dot(x, wx, preferred_element_type=jnp.float32)
    gh = jnp.dot(h.astype(cd), wh, preferred_element_type=jnp.float32)

    # Reset / update gates: sigmoid over the combined (x + h) pre-activation.
    pre_rz = gx[:, : 2 * H] + gh[:, : 2 * H] + brz_ref[...]
    rz = 1.0 / (1.0 + jnp.exp(-pre_rz))
    r = rz[:, :H]
    z = rz[:, H:]

    # Candidate: n = tanh((x W_i^T + b_i) + r * (h W_h^T + b_h))
    n = jnp.tanh(gx[:, 2 * H:] + bi_ref[...] + r * (gh[:, 2 * H:] + bh_ref[...]))

    h_f32 = h.astype(jnp.float32)
    out = (1.0 - z) * n + z * h_f32
    o_ref[...] = out.astype(o_ref.dtype)


def gru_cell_forward(x, hidden, w_gate, b_gate, w_i, b_i, w_h, b_h,
                     *, tb=None, compute_dtype=None):
    """Pallas implementation of GRUCell.forward (eval mode, dropout = identity)."""
    B, input_size = x.shape
    H = w_i.shape[0]
    out_dtype = x.dtype
    if hidden is None:
        hidden = jnp.zeros((B, H), dtype=x.dtype)
    if compute_dtype is None:
        compute_dtype = x.dtype
    compute_dtype = jnp.dtype(compute_dtype)

    # One-shot weight glue (tiny): fuse r/z gate slices and the candidate
    # projections into one wide matrix per operand stream.
    wxT = jnp.concatenate([w_gate[:, :input_size], w_i], axis=0).T   # (input, 3H)
    whT = jnp.concatenate([w_gate[:, input_size:], w_h], axis=0).T   # (H, 3H)
    brz = b_gate.reshape(1, 2 * H).astype(jnp.float32)
    bi = b_i.reshape(1, H).astype(jnp.float32)
    bh = b_h.reshape(1, H).astype(jnp.float32)

    if tb is None:
        # Prefer >= 2 grid steps (v7x dual TensorCores + pipeline overlap),
        # tiles a multiple of 8 sublanes, capped at 1024 rows.
        tb = B
        for cand in (1024, 512, 256, 128, 64, 32, 16, 8):
            if B % cand == 0 and B // cand >= 2:
                tb = cand
                break
    tb = min(tb, B)
    assert B % tb == 0, "batch must be divisible by the batch tile"
    assert tb % 8 == 0 or tb == B, "batch tile must be a multiple of 8 (or full B)"

    D = input_size + H
    grid = (B // tb,)

    in_itemsize = jnp.dtype(x.dtype).itemsize
    w_itemsize = jnp.dtype(wxT.dtype).itemsize
    flops = 2 * B * D * 3 * H + 10 * B * H
    bytes_accessed = ((B * input_size + B * H) * in_itemsize           # x, h
                      + (input_size * 3 * H + H * 3 * H) * w_itemsize  # weights
                      + (2 * H + H + H) * 4                            # biases
                      + B * H * jnp.dtype(out_dtype).itemsize)         # output

    kernel = functools.partial(gru_cell_kernel, compute_dtype=compute_dtype)

    return pl.pallas_call(
        kernel,
        out_shape=jax.ShapeDtypeStruct((B, H), out_dtype),
        grid_spec=pltpu.PrefetchScalarGridSpec(
            num_scalar_prefetch=0,
            grid=grid,
            in_specs=[
                pl.BlockSpec((tb, input_size), lambda i: (i, 0)),
                pl.BlockSpec((tb, H), lambda i: (i, 0)),
                pl.BlockSpec((input_size, 3 * H), lambda i: (0, 0)),
                pl.BlockSpec((H, 3 * H), lambda i: (0, 0)),
                pl.BlockSpec((1, 2 * H), lambda i: (0, 0)),
                pl.BlockSpec((1, H), lambda i: (0, 0)),
                pl.BlockSpec((1, H), lambda i: (0, 0)),
            ],
            out_specs=pl.BlockSpec((tb, H), lambda i: (i, 0)),
        ),
        compiler_params=pltpu.CompilerParams(
            dimension_semantics=("parallel",),
        ),
        cost_estimate=pl.CostEstimate(
            flops=flops,
            transcendentals=3 * B * H,
            bytes_accessed=bytes_accessed,
        ),
    )(x, hidden, wxT, whT, brz, bi, bh)


def gru_cell_reference(x, hidden, w_gate, b_gate, w_i, b_i, w_h, b_h):
    """Plain-JAX mirror of the PyTorch GRUCell.forward (eval mode)."""
    H = w_i.shape[0]
    if hidden is None:
        hidden = jnp.zeros((x.shape[0], H), dtype=x.dtype)
    combined = jnp.concatenate([x, hidden], axis=1)
    gates = combined @ w_gate.T + b_gate
    r = jax.nn.sigmoid(gates[:, :H])
    z = jax.nn.sigmoid(gates[:, H:])
    i_gate = x @ w_i.T + b_i
    h_gate = hidden @ w_h.T + b_h
    n = jnp.tanh(i_gate + r * h_gate)
    return (1.0 - z) * n + z * hidden


if __name__ == "__main__":
    # Small shapes consistent with the module (module uses batch=1024; keep small).
    B = 256
    input_size = 64
    hidden_size = 32
    dropout_p = 0.5    # inference-mode identity

    key = jax.random.PRNGKey(0)
    kx, kh, k1, k2, k3, k4, k5, k6 = jax.random.split(key, 8)

    x = jax.random.normal(kx, (B, input_size), dtype=jnp.float32)
    hidden = jax.random.normal(kh, (B, hidden_size), dtype=jnp.float32)

    def linear_init(kw, kb, out_f, in_f):
        bound = 1.0 / (in_f ** 0.5)
        w = jax.random.uniform(kw, (out_f, in_f), minval=-bound, maxval=bound,
                               dtype=jnp.float32)
        b = jax.random.uniform(kb, (out_f,), minval=-bound, maxval=bound,
                               dtype=jnp.float32)
        return w, b

    w_gate, b_gate = linear_init(k1, k2, 2 * hidden_size, input_size + hidden_size)
    w_i, b_i = linear_init(k3, k4, hidden_size, input_size)
    w_h, b_h = linear_init(k5, k6, hidden_size, hidden_size)

    # f32 path: must match the reference tightly.
    out = jax.block_until_ready(
        gru_cell_forward(x, hidden, w_gate, b_gate, w_i, b_i, w_h, b_h))
    ref = gru_cell_reference(x, hidden, w_gate, b_gate, w_i, b_i, w_h, b_h)
    assert out.shape == (B, hidden_size)
    assert jnp.allclose(out, ref, atol=1e-5, rtol=1e-5), "f32 mismatch vs reference"

    # hidden=None path (zeros hidden), like the PyTorch module.
    out0 = jax.block_until_ready(
        gru_cell_forward(x, None, w_gate, b_gate, w_i, b_i, w_h, b_h))
    ref0 = gru_cell_reference(x, None, w_gate, b_gate, w_i, b_i, w_h, b_h)
    assert jnp.allclose(out0, ref0, atol=1e-5, rtol=1e-5), "hidden=None mismatch"

    # bf16 compute path (in-kernel cast: no wrapper-side HBM cast pass,
    # bf16 MXU rate on v6e/v7x); f32 accumulation keeps the error small.
    out_bf = jax.block_until_ready(
        gru_cell_forward(x, hidden, w_gate, b_gate, w_i, b_i, w_h, b_h,
                         compute_dtype=jnp.bfloat16))
    assert jnp.allclose(out_bf, ref, atol=5e-2, rtol=5e-2), "bf16 mismatch"

    print("KERNEL_OK")
</pallas_src>

<mosaic_0001>
module attributes {stable_mosaic.version = 11 : i64} {
  func.func @gru_cell_kernel(%arg0: i32, %arg1: memref<128x64xf32, #tpu.memory_space<vmem>>, %arg2: memref<128x32xf32, #tpu.memory_space<vmem>>, %arg3: memref<64x96xf32, #tpu.memory_space<vmem>>, %arg4: memref<32x96xf32, #tpu.memory_space<vmem>>, %arg5: memref<1x64xf32, #tpu.memory_space<vmem>>, %arg6: memref<1x32xf32, #tpu.memory_space<vmem>>, %arg7: memref<1x32xf32, #tpu.memory_space<vmem>>, %arg8: memref<128x32xf32, #tpu.memory_space<vmem>>) attributes {dimension_semantics = [#tpu.dimension_semantics<parallel>], iteration_bounds = array<i64: 2>, scalar_prefetch = 0 : i64, scratch_operands = 0 : i64, tpu.core_type = #tpu.core_type<tc>, window_params = [{transform_indices = @transform_0, window_bounds = array<i64: 128, 64>}, {transform_indices = @transform_1, window_bounds = array<i64: 128, 32>}, {pipeline_mode = #tpu.pipeline_mode<synchronous>, transform_indices = @transform_2, window_bounds = array<i64: 64, 96>}, {pipeline_mode = #tpu.pipeline_mode<synchronous>, transform_indices = @transform_3, window_bounds = array<i64: 32, 96>}, {pipeline_mode = #tpu.pipeline_mode<synchronous>, transform_indices = @transform_4, window_bounds = array<i64: 1, 64>}, {pipeline_mode = #tpu.pipeline_mode<synchronous>, transform_indices = @transform_5, window_bounds = array<i64: 1, 32>}, {pipeline_mode = #tpu.pipeline_mode<synchronous>, transform_indices = @transform_6, window_bounds = array<i64: 1, 32>}, {transform_indices = @transform_7, window_bounds = array<i64: 128, 32>}]} {
    %c0 = arith.constant 0 : index
    %c0_0 = arith.constant 0 : index
    %0 = vector.load %arg1[%c0, %c0_0] : memref<128x64xf32, #tpu.memory_space<vmem>>, vector<128x64xf32>
    %c0_1 = arith.constant 0 : index
    %c0_2 = arith.constant 0 : index
    %1 = vector.load %arg2[%c0_1, %c0_2] : memref<128x32xf32, #tpu.memory_space<vmem>>, vector<128x32xf32>
    %c0_3 = arith.constant 0 : index
    %c0_4 = arith.constant 0 : index
    %2 = vector.load %arg3[%c0_3, %c0_4] : memref<64x96xf32, #tpu.memory_space<vmem>>, vector<64x96xf32>
    %c0_5 = arith.constant 0 : index
    %c0_6 = arith.constant 0 : index
    %3 = vector.load %arg4[%c0_5, %c0_6] : memref<32x96xf32, #tpu.memory_space<vmem>>, vector<32x96xf32>
    %cst = arith.constant dense<0.000000e+00> : vector<128x96xf32>
    %4 = tpu.matmul %0, %2, %cst {dimension_numbers = #tpu.dot_dimension_numbers<[1], [0], [0], [1], [0, 0, 1, 1], [], []>} : vector<128x64xf32>, vector<64x96xf32>, vector<128x96xf32> -> vector<128x96xf32>
    %cst_7 = arith.constant dense<0.000000e+00> : vector<128x96xf32>
    %5 = tpu.matmul %1, %3, %cst_7 {dimension_numbers = #tpu.dot_dimension_numbers<[1], [0], [0], [1], [0, 0, 1, 1], [], []>} : vector<128x32xf32>, vector<32x96xf32>, vector<128x96xf32> -> vector<128x96xf32>
    %6 = vector.extract_strided_slice %4 {offsets = [0, 0], sizes = [128, 64], strides = [1, 1]} : vector<128x96xf32> to vector<128x64xf32>
    %7 = vector.extract_strided_slice %5 {offsets = [0, 0], sizes = [128, 64], strides = [1, 1]} : vector<128x96xf32> to vector<128x64xf32>
    %8 = arith.addf %6, %7 : vector<128x64xf32>
    %c0_8 = arith.constant 0 : index
    %c0_9 = arith.constant 0 : index
    %9 = vector.load %arg5[%c0_8, %c0_9] : memref<1x64xf32, #tpu.memory_space<vmem>>, vector<1x64xf32>
    %10 = vector.broadcast %9 : vector<1x64xf32> to vector<128x64xf32>
    %11 = arith.addf %8, %10 : vector<128x64xf32>
    %cst_10 = arith.constant 0.000000e+00 : f32
    %12 = vector.broadcast %cst_10 : f32 to vector<128x64xf32>
    %13 = arith.subf %12, %11 : vector<128x64xf32>
    %14 = math.exp %13 : vector<128x64xf32>
    %cst_11 = arith.constant 1.000000e+00 : f32
    %15 = vector.broadcast %cst_11 : f32 to vector<128x64xf32>
    %16 = arith.addf %15, %14 : vector<128x64xf32>
    %cst_12 = arith.constant 1.000000e+00 : f32
    %17 = vector.broadcast %cst_12 : f32 to vector<128x64xf32>
    %18 = arith.divf %17, %16 : vector<128x64xf32>
    %19 = vector.extract_strided_slice %18 {offsets = [0, 0], sizes = [128, 32], strides = [1, 1]} : vector<128x64xf32> to vector<128x32xf32>
    %20 = vector.extract_strided_slice %18 {offsets = [0, 32], sizes = [128, 32], strides = [1, 1]} : vector<128x64xf32> to vector<128x32xf32>
    %21 = vector.extract_strided_slice %4 {offsets = [0, 64], sizes = [128, 32], strides = [1, 1]} : vector<128x96xf32> to vector<128x32xf32>
    %c0_13 = arith.constant 0 : index
    %c0_14 = arith.constant 0 : index
    %22 = vector.load %arg6[%c0_13, %c0_14] : memref<1x32xf32, #tpu.memory_space<vmem>>, vector<1x32xf32>
    %23 = vector.broadcast %22 : vector<1x32xf32> to vector<128x32xf32>
    %24 = arith.addf %21, %23 : vector<128x32xf32>
    %25 = vector.extract_strided_slice %5 {offsets = [0, 64], sizes = [128, 32], strides = [1, 1]} : vector<128x96xf32> to vector<128x32xf32>
    %c0_15 = arith.constant 0 : index
    %c0_16 = arith.constant 0 : index
    %26 = vector.load %arg7[%c0_15, %c0_16] : memref<1x32xf32, #tpu.memory_space<vmem>>, vector<1x32xf32>
    %27 = vector.broadcast %26 : vector<1x32xf32> to vector<128x32xf32>
    %28 = arith.addf %25, %27 : vector<128x32xf32>
    %29 = arith.mulf %19, %28 : vector<128x32xf32>
    %30 = arith.addf %24, %29 : vector<128x32xf32>
    %31 = math.tanh %30 : vector<128x32xf32>
    %cst_17 = arith.constant 1.000000e+00 : f32
    %32 = vector.broadcast %cst_17 : f32 to vector<128x32xf32>
    %33 = arith.subf %32, %20 : vector<128x32xf32>
    %34 = arith.mulf %33, %31 : vector<128x32xf32>
    %35 = arith.mulf %20, %1 : vector<128x32xf32>
    %36 = arith.addf %34, %35 : vector<128x32xf32>
    %c0_18 = arith.constant 0 : index
    %c0_19 = arith.constant 0 : index
    %37 = vector.load %arg8[%c0_18, %c0_19] : memref<128x32xf32, #tpu.memory_space<vmem>>, vector<128x32xf32>
    tpu.vector_store %arg8[%c0_18, %c0_19], %36 {strides = array<i32>} : memref<128x32xf32, #tpu.memory_space<vmem>>, vector<128x32xf32>,
    return
  }
  func.func @transform_0(%arg0: i32) -> (i32, i32) {
    %c0_i32 = arith.constant 0 : i32
    %c0_i32_0 = arith.constant 0 : i32
    return %arg0, %c0_i32 : i32, i32
  }
  func.func @transform_1(%arg0: i32) -> (i32, i32) {
    %c0_i32 = arith.constant 0 : i32
    %c0_i32_0 = arith.constant 0 : i32
    return %arg0, %c0_i32 : i32, i32
  }
  func.func @transform_2(%arg0: i32) -> (i32, i32) {
    %c0_i32 = arith.constant 0 : i32
    %c0_i32_0 = arith.constant 0 : i32
    %c0_i32_1 = arith.constant 0 : i32
    return %c0_i32, %c0_i32_0 : i32, i32
  }
  func.func @transform_3(%arg0: i32) -> (i32, i32) {
    %c0_i32 = arith.constant 0 : i32
    %c0_i32_0 = arith.constant 0 : i32
    %c0_i32_1 = arith.constant 0 : i32
    return %c0_i32, %c0_i32_0 : i32, i32
  }
  func.func @transform_4(%arg0: i32) -> (i32, i32) {
    %c0_i32 = arith.constant 0 : i32
    %c0_i32_0 = arith.constant 0 : i32
    %c0_i32_1 = arith.constant 0 : i32
    return %c0_i32, %c0_i32_0 : i32, i32
  }
  func.func @transform_5(%arg0: i32) -> (i32, i32) {
    %c0_i32 = arith.constant 0 : i32
    %c0_i32_0 = arith.constant 0 : i32
    %c0_i32_1 = arith.constant 0 : i32
    return %c0_i32, %c0_i32_0 : i32, i32
  }
  func.func @transform_6(%arg0: i32) -> (i32, i32) {
    %c0_i32 = arith.constant 0 : i32
    %c0_i32_0 = arith.constant 0 : i32
    %c0_i32_1 = arith.constant 0 : i32
    return %c0_i32, %c0_i32_0 : i32, i32
  }
  func.func @transform_7(%arg0: i32) -> (i32, i32) {
    %c0_i32 = arith.constant 0 : i32
    %c0_i32_0 = arith.constant 0 : i32
    return %arg0, %c0_i32 : i32, i32
  }
}

</mosaic_0001>

<llo_original>
// kernel: tpu_custom_call.1
$region0: #{tpu_custom_call.1}
  #allocation0 [shape = 'u32[]', space=smem, size = 0x4, offset = 0x4, fixed_abs, tag = 'smem constant byte address 0x4 - core index']
  #allocation1 [shape = 'u32[72,128]{1,0:T(1,128)}', space=vmem, size = 0x9000, scoped, tag = 'internal scratch']
  %s0 = inlined_call_operand.vmem [shape: f32[256,64], index: 0, kind: input, shape index: {}]
  %s1 = inlined_call_operand.vmem [shape: f32[256,32], index: 1, kind: input, shape index: {}]
  %s2 = inlined_call_operand.vmem [shape: f32[64,96], index: 2, kind: input, shape index: {}]
  %s3 = inlined_call_operand.vmem [shape: f32[32,96], index: 3, kind: input, shape index: {}]
  %s4 = inlined_call_operand.vmem [shape: f32[1,64], index: 4, kind: input, shape index: {}]
  %s5 = inlined_call_operand.vmem [shape: f32[1,32], index: 5, kind: input, shape index: {}]
  %s6 = inlined_call_operand.vmem [shape: f32[1,32], index: 6, kind: input, shape index: {}]
  %s7 = inlined_call_operand.vmem [shape: f32[256,32], index: 7, kind: output, shape index: {}]
  %s8 = sld [smem:[#allocation0]]
  $region61: #{tpu_custom_call.1} parent=0
    _
  %s10 = ssub.s32 1, %s8
  %s11 = scalar_select 0, %s10, %s8
  loop: start=0, step=1, limit=4
  $region2: #{tpu_custom_call.1} parent=0 // loop_pre_header
    _
  $region3: #{tpu_custom_call.1} parent=0 // loop_header
    %s13 = sphi 0, %s17
    %p14 = scmp.ge.s32.totalorder %s13, 4
    %s23 = sphi 0, %s25
    %s26 = sphi 0, %s23
    %s27 = sphi 0, %s26
    %s43 = sphi 0, %s27
    %s49 = sphi 0, %s51
    %s52 = sphi 0, %s49
    %s53 = sphi 0, %s52
    %s69 = sphi 0, %s53
    %s73 = sphi 0, %s73
    %s75 = sphi 0, %s73
    %s76 = sphi 0, %s75
    %s90 = sphi 0, %s76
    %s94 = sphi 0, %s94
    %s96 = sphi 0, %s94
    %s97 = sphi 0, %s96
    %s111 = sphi 0, %s97
    %s115 = sphi 0, %s115
    %s117 = sphi 0, %s115
    %s118 = sphi 0, %s117
    %s132 = sphi 0, %s118
    %s136 = sphi 0, %s136
    %s138 = sphi 0, %s136
    %s139 = sphi 0, %s138
    %s153 = sphi 0, %s139
    %s157 = sphi 0, %s157
    %s159 = sphi 0, %s157
    %s160 = sphi 0, %s159
    %s174 = sphi 0, %s160
    %s180 = sphi 0, %s182
    %s183 = sphi 0, %s180
    %s184 = sphi 0, %s183
    %s200 = sphi 0, %s184
  $region4: #{tpu_custom_call.1} parent=0 // loop_header_branch
    %16 = sbr.rel (%p14) target = $region8
  $region5: #{tpu_custom_call.1} parent=0 // loop_body
    %s18 = ssub.s32 %s13, 1
    %s19 = ssub.s32 %s13, 2
    %s20 = sadd.s32 %s13, 1
    %s21 = ssub.s32 %s13, %s20
    %p22 = scmp.eq.s32.totalorder %s21, 0
    %s24 = sadd.s32 %s23, 1
    %s25 = scalar_select %p22, %s23, %s24
    %p28 = pneg %p22
    %p29 = scmp.eq.s32.totalorder %s13, 1
    %p30 = por %p28, %p29
    %p31 = scmp.ne.s32.totalorder %s23, %s26
    %p32 = scmp.eq.s32.totalorder %s13, 0
    %p33 = por %p31, %p32
    %p34 = scmp.ne.s32.totalorder %s23, %s26
    %p35 = scmp.eq.s32.totalorder %s18, 1
    %p36 = por %p34, %p35
    %p37 = scmp.ne.s32.totalorder %s26, %s27
    %p38 = scmp.eq.s32.totalorder %s18, 0
    %p39 = por %p37, %p38
    %p40 = scmp.ne.s32.totalorder %s26, %s27
    %p41 = scmp.eq.s32.totalorder %s19, 1
    %p42 = por %p40, %p41
    %p44 = scmp.ne.s32.totalorder %s27, %s43
    %p45 = scmp.eq.s32.totalorder %s19, 0
    %p46 = por %p44, %p45
    %s47 = ssub.s32 %s13, %s20
    %p48 = scmp.eq.s32.totalorder %s47, 0
    %s50 = sadd.s32 %s49, 1
    %s51 = scalar_select %p48, %s49, %s50
    %p54 = pneg %p48
    %p55 = scmp.eq.s32.totalorder %s13, 1
    %p56 = por %p54, %p55
    %p57 = scmp.ne.s32.totalorder %s49, %s52
    %p58 = scmp.eq.s32.totalorder %s13, 0
    %p59 = por %p57, %p58
    %p60 = scmp.ne.s32.totalorder %s49, %s52
    %p61 = scmp.eq.s32.totalorder %s18, 1
    %p62 = por %p60, %p61
    %p63 = scmp.ne.s32.totalorder %s52, %s53
    %p64 = scmp.eq.s32.totalorder %s18, 0
    %p65 = por %p63, %p64
    %p66 = scmp.ne.s32.totalorder %s52, %s53
    %p67 = scmp.eq.s32.totalorder %s19, 1
    %p68 = por %p66, %p67
    %p70 = scmp.ne.s32.totalorder %s53, %s69
    %p71 = scmp.eq.s32.totalorder %s19, 0
    %p72 = por %p70, %p71
    %s74 = sadd.s32 %s73, 1
    %p77 = scmp.eq.s32.totalorder %s13, 1
    %p78 = scmp.ne.s32.totalorder %s73, %s75
    %p79 = scmp.eq.s32.totalorder %s13, 0
    %p80 = por %p78, %p79
    %p81 = scmp.ne.s32.totalorder %s73, %s75
    %p82 = scmp.eq.s32.totalorder %s18, 1
    %p83 = por %p81, %p82
    %p84 = scmp.ne.s32.totalorder %s75, %s76
    %p85 = scmp.eq.s32.totalorder %s18, 0
    %p86 = por %p84, %p85
    %p87 = scmp.ne.s32.totalorder %s75, %s76
    %p88 = scmp.eq.s32.totalorder %s19, 1
    %p89 = por %p87, %p88
    %p91 = scmp.ne.s32.totalorder %s76, %s90
    %p92 = scmp.eq.s32.totalorder %s19, 0
    %p93 = por %p91, %p92
    %s95 = sadd.s32 %s94, 1
    %p98 = scmp.eq.s32.totalorder %s13, 1
    %p99 = scmp.ne.s32.totalorder %s94, %s96
    %p100 = scmp.eq.s32.totalorder %s13, 0
    %p101 = por %p99, %p100
    %p102 = scmp.ne.s32.totalorder %s94, %s96
    %p103 = scmp.eq.s32.totalorder %s18, 1
    %p104 = por %p102, %p103
    %p105 = scmp.ne.s32.totalorder %s96, %s97
    %p106 = scmp.eq.s32.totalorder %s18, 0
    %p107 = por %p105, %p106
    %p108 = scmp.ne.s32.totalorder %s96, %s97
    %p109 = scmp.eq.s32.totalorder %s19, 1
    %p110 = por %p108, %p109
    %p112 = scmp.ne.s32.totalorder %s97, %s111
    %p113 = scmp.eq.s32.totalorder %s19, 0
    %p114 = por %p112, %p113
    %s116 = sadd.s32 %s115, 1
    %p119 = scmp.eq.s32.totalorder %s13, 1
    %p120 = scmp.ne.s32.totalorder %s115, %s117
    %p121 = scmp.eq.s32.totalorder %s13, 0
    %p122 = por %p120, %p121
    %p123 = scmp.ne.s32.totalorder %s115, %s117
    %p124 = scmp.eq.s32.totalorder %s18, 1
    %p125 = por %p123, %p124
    %p126 = scmp.ne.s32.totalorder %s117, %s118
    %p127 = scmp.eq.s32.totalorder %s18, 0
    %p128 = por %p126, %p127
    %p129 = scmp.ne.s32.totalorder %s117, %s118
    %p130 = scmp.eq.s32.totalorder %s19, 1
    %p131 = por %p129, %p130
    %p133 = scmp.ne.s32.totalorder %s118, %s132
    %p134 = scmp.eq.s32.totalorder %s19, 0
    %p135 = por %p133, %p134
    %s137 = sadd.s32 %s136, 1
    %p140 = scmp.eq.s32.totalorder %s13, 1
    %p141 = scmp.ne.s32.totalorder %s136, %s138
    %p142 = scmp.eq.s32.totalorder %s13, 0
    %p143 = por %p141, %p142
    %p144 = scmp.ne.s32.totalorder %s136, %s138
    %p145 = scmp.eq.s32.totalorder %s18, 1
    %p146 = por %p144, %p145
    %p147 = scmp.ne.s32.totalorder %s138, %s139
    %p148 = scmp.eq.s32.totalorder %s18, 0
    %p149 = por %p147, %p148
    %p150 = scmp.ne.s32.totalorder %s138, %s139
    %p151 = scmp.eq.s32.totalorder %s19, 1
    %p152 = por %p150, %p151
    %p154 = scmp.ne.s32.totalorder %s139, %s153
    %p155 = scmp.eq.s32.totalorder %s19, 0
    %p156 = por %p154, %p155
    %s158 = sadd.s32 %s157, 1
    %p161 = scmp.eq.s32.totalorder %s13, 1
    %p162 = scmp.ne.s32.totalorder %s157, %s159
    %p163 = scmp.eq.s32.totalorder %s13, 0
    %p164 = por %p162, %p163
    %p165 = scmp.ne.s32.totalorder %s157, %s159
    %p166 = scmp.eq.s32.totalorder %s18, 1
    %p167 = por %p165, %p166
    %p168 = scmp.ne.s32.totalorder %s159, %s160
    %p169 = scmp.eq.s32.totalorder %s18, 0
    %p170 = por %p168, %p169
    %p171 = scmp.ne.s32.totalorder %s159, %s160
    %p172 = scmp.eq.s32.totalorder %s19, 1
    %p173 = por %p171, %p172
    %p175 = scmp.ne.s32.totalorder %s160, %s174
    %p176 = scmp.eq.s32.totalorder %s19, 0
    %p177 = por %p175, %p176
    %s178 = ssub.s32 %s13, %s20
    %p179 = scmp.eq.s32.totalorder %s178, 0
    %s181 = sadd.s32 %s180, 1
    %s182 = scalar_select %p179, %s180, %s181
    %p185 = pneg %p179
    %p186 = scmp.eq.s32.totalorder %s13, 1
    %p187 = por %p185, %p186
    %p188 = scmp.ne.s32.totalorder %s180, %s183
    %p189 = scmp.eq.s32.totalorder %s13, 0
    %p190 = por %p188, %p189
    %p191 = scmp.ne.s32.totalorder %s180, %s183
    %p192 = scmp.eq.s32.totalorder %s18, 1
    %p193 = por %p191, %p192
    %p194 = scmp.ne.s32.totalorder %s183, %s184
    %p195 = scmp.eq.s32.totalorder %s18, 0
    %p196 = por %p194, %p195
    %p197 = scmp.ne.s32.totalorder %s183, %s184
    %p198 = scmp.eq.s32.totalorder %s19, 1
    %p199 = por %p197, %p198
    %p201 = scmp.ne.s32.totalorder %s184, %s200
    %p202 = scmp.eq.s32.totalorder %s19, 0
    %p203 = por %p201, %p202
    %p204 = scmp.le.s32.totalorder 1, %s13
    %p205 = scmp.lt.s32.totalorder %s13, 3
    %p206 = pnand %p204, %p205
    %p207 = pneg %p206
    // Predicated region
    $region9: #{tpu_custom_call.1} parent=5 // pred_check
      _
    $region10: #{tpu_custom_call.1} parent=5 // pred_check_branch
      %209 = sbr.rel (%p206) target = $region12
    $region11: #{tpu_custom_call.1} parent=5 // pred_region
      %s210 = ssub.s32 %s13, 1
      // Predicated region
      $region13: #{tpu_custom_call.1} parent=11 // pred_check
        %p211 = pneg %p86
      $region14: #{tpu_custom_call.1} parent=11 // pred_check_branch
        %213 = sbr.rel (%p211) target = $region16
      $region15: #{tpu_custom_call.1} parent=11 // pred_region
        _
      $region16: #{tpu_custom_call.1} parent=11 // pred_fallthru
        _
      // Predicated region
      $region17: #{tpu_custom_call.1} parent=11 // pred_check
        %p214 = pneg %p107
      $region18: #{tpu_custom_call.1} parent=11 // pred_check_branch
        %216 = sbr.rel (%p214) target = $region20
      $region19: #{tpu_custom_call.1} parent=11 // pred_region
        _
      $region20: #{tpu_custom_call.1} parent=11 // pred_fallthru
        _
      // Predicated region
      $region21: #{tpu_custom_call.1} parent=11 // pred_check
        %p217 = pneg %p128
      $region22: #{tpu_custom_call.1} parent=11 // pred_check_branch
        %219 = sbr.rel (%p217) target = $region24
      $region23: #{tpu_custom_call.1} parent=11 // pred_region
        _
      $region24: #{tpu_custom_call.1} parent=11 // pred_fallthru
        _
      // Predicated region
      $region25: #{tpu_custom_call.1} parent=11 // pred_check
        %p220 = pneg %p149
      $region26: #{tpu_custom_call.1} parent=11 // pred_check_branch
        %222 = sbr.rel (%p220) target = $region28
      $region27: #{tpu_custom_call.1} parent=11 // pred_region
        _
      $region28: #{tpu_custom_call.1} parent=11 // pred_fallthru
        _
      // Predicated region
      $region29: #{tpu_custom_call.1} parent=11 // pred_check
        %p223 = pneg %p170
      $region30: #{tpu_custom_call.1} parent=11 // pred_check_branch
        %225 = sbr.rel (%p223) target = $region32
      $region31: #{tpu_custom_call.1} parent=11 // pred_region
        _
      $region32: #{tpu_custom_call.1} parent=11 // pred_fallthru
        _
    $region12: #{tpu_custom_call.1} parent=5 // pred_fallthru
      _
    %p226 = scmp.lt.s32.totalorder %s13, 2
    // Predicated region
    $region33: #{tpu_custom_call.1} parent=5 // pred_check
      %p227 = pneg %p226
    $region34: #{tpu_custom_call.1} parent=5 // pred_check_branch
      %229 = sbr.rel (%p227) target = $region36
    $region35: #{tpu_custom_call.1} parent=5 // pred_region
      // Predicated region
      $region37: #{tpu_custom_call.1} parent=35 // pred_check
        %p230 = pneg %p33
      $region38: #{tpu_custom_call.1} parent=35 // pred_check_branch
        %232 = sbr.rel (%p230) target = $region40
      $region39: #{tpu_custom_call.1} parent=35 // pred_region
        %s233 = smul.u32 16, %s13
        %p234 = scmp.lt.s32.totalorder %s233, 31
        %s235 = scalar_select %p234, %s233, 31
        %s236 = smul.addr %s235, 8
        %s237 = scalar_lea.vmem %s0, %s236
        %s238 = smul.u32 16, %s13
      $region40: #{tpu_custom_call.1} parent=35 // pred_fallthru
        _
      // Predicated region
      $region41: #{tpu_custom_call.1} parent=35 // pred_check
        %p239 = pneg %p59
      $region42: #{tpu_custom_call.1} parent=35 // pred_check_branch
        %241 = sbr.rel (%p239) target = $region44
      $region43: #{tpu_custom_call.1} parent=35 // pred_region
        %s242 = smul.u32 16, %s13
        %p243 = scmp.lt.s32.totalorder %s242, 31
        %s244 = scalar_select %p243, %s242, 31
        %s245 = smul.addr %s244, 8
        %s246 = scalar_lea.vmem %s1, %s245
        %s247 = smul.u32 16, %s13
      $region44: #{tpu_custom_call.1} parent=35 // pred_fallthru
        _
    $region36: #{tpu_custom_call.1} parent=5 // pred_fallthru
      _
    %p248 = scmp.le.s32.totalorder 1, %s13
    %p249 = scmp.lt.s32.totalorder %s13, 3
    %p250 = pnand %p248, %p249
    %p251 = pneg %p250
    // Predicated region
    $region45: #{tpu_custom_call.1} parent=5 // pred_check
      _
    $region46: #{tpu_custom_call.1} parent=5 // pred_check_branch
      %253 = sbr.rel (%p250) target = $region48
    $region47: #{tpu_custom_call.1} parent=5 // pred_region
      %s254 = ssub.s32 %s13, 1
      %s255 = smul.u32 16, %s18
      %p256 = scmp.lt.s32.totalorder %s255, 31
      %s257 = scalar_select %p256, %s255, 31
      %s258 = smul.addr %s257, 8
      %s259 = scalar_lea.vmem %s0, %s258
      %p260 = pneg %p39
      %p261 = pneg %p36
      %s262 = smul.u32 16, %s18
      %p263 = scmp.lt.s32.totalorder %s262, 31
      %s264 = scalar_select %p263, %s262, 31
      %s265 = smul.addr %s264, 8
      %s266 = scalar_lea.vmem %s1, %s265
      %p267 = pneg %p65
      %p268 = pneg %p62
      %p269 = pneg %p86
      %p270 = pneg %p83
      %p271 = pneg %p107
      %p272 = pneg %p104
      %p273 = pneg %p128
      %p274 = pneg %p125
      %p275 = pneg %p149
      %p276 = pneg %p146
      %p277 = pneg %p170
      %p278 = pneg %p167
      %p279 = pneg %p196
      %p280 = pneg %p193
      %s281 = smul.u32 16, %s18
      %p282 = scmp.lt.s32.totalorder %s281, 31
      %s283 = scalar_select %p282, %s281, 31
      %s284 = smul.addr %s283, 8
      %s285 = scalar_lea.vmem %s7, %s284
      %s286 = smul.u32 16, %s18
      %p287 = scmp.lt.s32.totalorder %s286, 31
      %s288 = scalar_select %p287, %s286, 31
      %s289 = smul.addr %s288, 8
      %s290 = scalar_lea.vmem %s0, %s289
      %s291 = smul.u32 16, %s18
      %s292 = smul.u32 16, %s18
      %p293 = scmp.lt.s32.totalorder %s292, 31
      %s294 = scalar_select %p293, %s292, 31
      %s295 = smul.addr %s294, 8
      %s296 = scalar_lea.vmem %s1, %s295
      %s297 = smul.u32 16, %s18
      %s298 = smul.u32 16, %s18
      %p299 = scmp.lt.s32.totalorder %s298, 31
      %s300 = scalar_select %p299, %s298, 31
      %s301 = smul.addr %s300, 8
      %s302 = scalar_lea.vmem %s7, %s301
      %s303 = smul.u32 16, %s18
      %v304 = vld [vmem:[%s290] sm:$0xff]
      %v305 = vld [vmem:[%s290 + $0x8] sm:$0xff]
      %v306 = vld [vmem:[%s290 + $0x10] sm:$0xff]
      %v307 = vld [vmem:[%s290 + $0x18] sm:$0xff]
      %v308 = vld [vmem:[%s290 + $0x20] sm:$0xff]
      %v309 = vld [vmem:[%s290 + $0x28] sm:$0xff]
      %v310 = vld [vmem:[%s290 + $0x30] sm:$0xff]
      %v311 = vld [vmem:[%s290 + $0x38] sm:$0xff]
      %v312 = vld [vmem:[%s290 + $0x40] sm:$0xff]
      %v313 = vld [vmem:[%s290 + $0x48] sm:$0xff]
      %v314 = vld [vmem:[%s290 + $0x50] sm:$0xff]
      %v315 = vld [vmem:[%s290 + $0x58] sm:$0xff]
      %v316 = vld [vmem:[%s290 + $0x60] sm:$0xff]
      %v317 = vld [vmem:[%s290 + $0x68] sm:$0xff]
      %v318 = vld [vmem:[%s290 + $0x70] sm:$0xff]
      %v319 = vld [vmem:[%s290 + $0x78] sm:$0xff]
      %v320 = vld [vmem:[%s296] sm:$0xff]
      %v321 = vld [vmem:[%s296 + $0x8] sm:$0xff]
      %v322 = vld [vmem:[%s296 + $0x10] sm:$0xff]
      %v323 = vld [vmem:[%s296 + $0x18] sm:$0xff]
      %v324 = vld [vmem:[%s296 + $0x20] sm:$0xff]
      %v325 = vld [vmem:[%s296 + $0x28] sm:$0xff]
      %v326 = vld [vmem:[%s296 + $0x30] sm:$0xff]
      %v327 = vld [vmem:[%s296 + $0x38] sm:$0xff]
      %v328 = vld [vmem:[%s296 + $0x40] sm:$0xff]
      %v329 = vld [vmem:[%s296 + $0x48] sm:$0xff]
      %v330 = vld [vmem:[%s296 + $0x50] sm:$0xff]
      %v331 = vld [vmem:[%s296 + $0x58] sm:$0xff]
      %v332 = vld [vmem:[%s296 + $0x60] sm:$0xff]
      %v333 = vld [vmem:[%s296 + $0x68] sm:$0xff]
      %v334 = vld [vmem:[%s296 + $0x70] sm:$0xff]
      %v335 = vld [vmem:[%s296 + $0x78] sm:$0xff]
      %v336 = vld [vmem:[%s2] sm:$0xff]
      %v337 = vld [vmem:[%s2 + $0x8] sm:$0xff]
      %v338 = vld [vmem:[%s2 + $0x10] sm:$0xff]
      %v339 = vld [vmem:[%s2 + $0x18] sm:$0xff]
      %v340 = vld [vmem:[%s2 + $0x20] sm:$0xff]
      %v341 = vld [vmem:[%s2 + $0x28] sm:$0xff]
      %v342 = vld [vmem:[%s2 + $0x30] sm:$0xff]
      %v343 = vld [vmem:[%s2 + $0x38] sm:$0xff]
      %v344 = vld [vmem:[%s3] sm:$0xff]
      %v345 = vld [vmem:[%s3 + $0x8] sm:$0xff]
      %v346 = vld [vmem:[%s3 + $0x10] sm:$0xff]
      %v347 = vld [vmem:[%s3 + $0x18] sm:$0xff]
      %vm348 = vcmask 523264
      %v350 = vsel %vm348, %v304, 0
      %v353 = vsel %vm348, %v305, 0
      %v356 = vsel %vm348, %v306, 0
      %v359 = vsel %vm348, %v307, 0
      %v362 = vsel %vm348, %v308, 0
      %v365 = vsel %vm348, %v309, 0
      %v368 = vsel %vm348, %v310, 0
      %v371 = vsel %vm348, %v311, 0
      %v374 = vsel %vm348, %v312, 0
      %v377 = vsel %vm348, %v313, 0
      %v380 = vsel %vm348, %v314, 0
      %v383 = vsel %vm348, %v315, 0
      %v386 = vsel %vm348, %v316, 0
      %v389 = vsel %vm348, %v317, 0
      %v392 = vsel %vm348, %v318, 0
      %v395 = vsel %vm348, %v319, 0
      %397 = vmatpush.msra.mxu0 0.0
      %398 = vmatpush.msra.mxu0 0.0
      %399 = vmatpush.msra.mxu0 0.0
      %400 = vmatpush.msra.mxu0 0.0
      %401 = vmatpush.msra.mxu0 0.0
      %402 = vmatpush.msra.mxu0 0.0
      %403 = vmatpush.msra.mxu0 0.0
      %404 = vmatpush.msra.mxu0 0.0
      %405 = vmatpush.msra.mxu0 %v343
      %406 = vmatpush.msra.mxu0 %v342
      %407 = vmatpush.msra.mxu0 %v341
      %408 = vmatpush.msra.mxu0 %v340
      %409 = vmatpush.msra.mxu0 %v339
      %410 = vmatpush.msra.mxu0 %v338
      %411 = vmatpush.msra.mxu0 %v337
      %412 = vmatpush.msra.mxu0 %v336
      %413 = vmatmul.f32.gmra.mxu0 %v350
      %v414 = vpop.f32.mrf.mxu0
      %v415 = vadd.f32 0.0, %v414
      %416 = vmatmul.f32.gmra.mxu0 %v353
      %v417 = vpop.f32.mrf.mxu0
      %v418 = vadd.f32 0.0, %v417
      %419 = vmatmul.f32.gmra.mxu0 %v356
      %v420 = vpop.f32.mrf.mxu0
      %v421 = vadd.f32 0.0, %v420
      %422 = vmatmul.f32.gmra.mxu0 %v359
      %v423 = vpop.f32.mrf.mxu0
      %v424 = vadd.f32 0.0, %v423
      %425 = vmatmul.f32.gmra.mxu0 %v362
      %v426 = vpop.f32.mrf.mxu0
      %v427 = vadd.f32 0.0, %v426
      %428 = vmatmul.f32.gmra.mxu0 %v365
      %v429 = vpop.f32.mrf.mxu0
      %v430 = vadd.f32 0.0, %v429
      %431 = vmatmul.f32.gmra.mxu0 %v368
      %v432 = vpop.f32.mrf.mxu0
      %v433 = vadd.f32 0.0, %v432
      %434 = vmatmul.f32.gmra.mxu0 %v371
      %v435 = vpop.f32.mrf.mxu0
      %v436 = vadd.f32 0.0, %v435
      %437 = vmatmul.f32.gmra.mxu0 %v374
      %v438 = vpop.f32.mrf.mxu0
      %v439 = vadd.f32 0.0, %v438
      %440 = vmatmul.f32.gmra.mxu0 %v377
      %v441 = vpop.f32.mrf.mxu0
      %v442 = vadd.f32 0.0, %v441
      %443 = vmatmul.f32.gmra.mxu0 %v380
      %v444 = vpop.f32.mrf.mxu0
      %v445 = vadd.f32 0.0, %v444
      %446 = vmatmul.f32.gmra.mxu0 %v383
      %v447 = vpop.f32.mrf.mxu0
      %v448 = vadd.f32 0.0, %v447
      %449 = vmatmul.f32.gmra.mxu0 %v386
      %v450 = vpop.f32.mrf.mxu0
      %v451 = vadd.f32 0.0, %v450
      %452 = vmatmul.f32.gmra.mxu0 %v389
      %v453 = vpop.f32.mrf.mxu0
      %v454 = vadd.f32 0.0, %v453
      %455 = vmatmul.f32.gmra.mxu0 %v392
      %v456 = vpop.f32.mrf.mxu0
      %v457 = vadd.f32 0.0, %v456
      %458 = vmatmul.f32.gmra.mxu0 %v395
      %v459 = vpop.f32.mrf.mxu0
      %v460 = vadd.f32 0.0, %v459
      %461 = vdwg.mxu0
      %vm462 = vcmask 261120
      %v464 = vsel %vm462, %v320, 0
      %v467 = vsel %vm462, %v321, 0
      %v470 = vsel %vm462, %v322, 0
      %v473 = vsel %vm462, %v323, 0
      %v476 = vsel %vm462, %v324, 0
      %v479 = vsel %vm462, %v325, 0
      %v482 = vsel %vm462, %v326, 0
      %v485 = vsel %vm462, %v327, 0
      %v488 = vsel %vm462, %v328, 0
      %v491 = vsel %vm462, %v329, 0
      %v494 = vsel %vm462, %v330, 0
      %v497 = vsel %vm462, %v331, 0
      %v500 = vsel %vm462, %v332, 0
      %v503 = vsel %vm462, %v333, 0
      %v506 = vsel %vm462, %v334, 0
      %v509 = vsel %vm462, %v335, 0
      %511 = vmatpush.msra.mxu0 0.0
      %512 = vmatpush.msra.mxu0 0.0
      %513 = vmatpush.msra.mxu0 0.0
      %514 = vmatpush.msra.mxu0 0.0
      %515 = vmatpush.msra.mxu0 0.0
      %516 = vmatpush.msra.mxu0 0.0
      %517 = vmatpush.msra.mxu0 0.0
      %518 = vmatpush.msra.mxu0 0.0
      %519 = vmatpush.msra.mxu0 0.0
      %520 = vmatpush.msra.mxu0 0.0
      %521 = vmatpush.msra.mxu0 0.0
      %522 = vmatpush.msra.mxu0 0.0
      %523 = vmatpush.msra.mxu0 %v347
      %524 = vmatpush.msra.mxu0 %v346
      %525 = vmatpush.msra.mxu0 %v345
      %526 = vmatpush.msra.mxu0 %v344
      %527 = vmatmul.f32.gmra.mxu0 %v464
      %v528 = vpop.f32.mrf.mxu0
      %v529 = vadd.f32 0.0, %v528
      %530 = vmatmul.f32.gmra.mxu0 %v467
      %v531 = vpop.f32.mrf.mxu0
      %v532 = vadd.f32 0.0, %v531
      %533 = vmatmul.f32.gmra.mxu0 %v470
      %v534 = vpop.f32.mrf.mxu0
      %v535 = vadd.f32 0.0, %v534
      %536 = vmatmul.f32.gmra.mxu0 %v473
      %v537 = vpop.f32.mrf.mxu0
      %v538 = vadd.f32 0.0, %v537
      %539 = vmatmul.f32.gmra.mxu0 %v476
      %v540 = vpop.f32.mrf.mxu0
      %v541 = vadd.f32 0.0, %v540
      %542 = vmatmul.f32.gmra.mxu0 %v479
      %v543 = vpop.f32.mrf.mxu0
      %v544 = vadd.f32 0.0, %v543
      %545 = vmatmul.f32.gmra.mxu0 %v482
      %v546 = vpop.f32.mrf.mxu0
      %v547 = vadd.f32 0.0, %v546
      %548 = vmatmul.f32.gmra.mxu0 %v485
      %v549 = vpop.f32.mrf.mxu0
      %v550 = vadd.f32 0.0, %v549
      %551 = vmatmul.f32.gmra.mxu0 %v488
      %v552 = vpop.f32.mrf.mxu0
      %v553 = vadd.f32 0.0, %v552
      %554 = vmatmul.f32.gmra.mxu0 %v491
      %v555 = vpop.f32.mrf.mxu0
      %v556 = vadd.f32 0.0, %v555
      %557 = vmatmul.f32.gmra.mxu0 %v494
      %v558 = vpop.f32.mrf.mxu0
      %v559 = vadd.f32 0.0, %v558
      %560 = vmatmul.f32.gmra.mxu0 %v497
      %v561 = vpop.f32.mrf.mxu0
      %v562 = vadd.f32 0.0, %v561
      %563 = vmatmul.f32.gmra.mxu0 %v500
      %v564 = vpop.f32.mrf.mxu0
      %v565 = vadd.f32 0.0, %v564
      %566 = vmatmul.f32.gmra.mxu0 %v503
      %v567 = vpop.f32.mrf.mxu0
      %v568 = vadd.f32 0.0, %v567
      %569 = vmatmul.f32.gmra.mxu0 %v506
      %v570 = vpop.f32.mrf.mxu0
      %v571 = vadd.f32 0.0, %v570
      %572 = vmatmul.f32.gmra.mxu0 %v509
      %v573 = vpop.f32.mrf.mxu0
      %v574 = vadd.f32 0.0, %v573
      %575 = vdwg.mxu0
      %v576 = vadd.f32 %v415, %v529
      %v577 = vadd.f32 %v418, %v532
      %v578 = vadd.f32 %v421, %v535
      %v579 = vadd.f32 %v424, %v538
      %v580 = vadd.f32 %v427, %v541
      %v581 = vadd.f32 %v430, %v544
      %v582 = vadd.f32 %v433, %v547
      %v583 = vadd.f32 %v436, %v550
      %v584 = vadd.f32 %v439, %v553
      %v585 = vadd.f32 %v442, %v556
      %v586 = vadd.f32 %v445, %v559
      %v587 = vadd.f32 %v448, %v562
      %v588 = vadd.f32 %v451, %v565
      %v589 = vadd.f32 %v454, %v568
      %v590 = vadd.f32 %v457, %v571
      %v591 = vadd.f32 %v460, %v574
      %v592 = vld [vmem:[%s4] sm:$0x1]
      %v594 = vperm.slane %v592, 0
      %v596 = vadd.f32 %v576, %v594
      %v597 = vadd.f32 %v577, %v594
      %v598 = vadd.f32 %v578, %v594
      %v599 = vadd.f32 %v579, %v594
      %v600 = vadd.f32 %v580, %v594
      %v601 = vadd.f32 %v581, %v594
      %v602 = vadd.f32 %v582, %v594
      %v603 = vadd.f32 %v583, %v594
      %v604 = vadd.f32 %v584, %v594
      %v605 = vadd.f32 %v585, %v594
      %v606 = vadd.f32 %v586, %v594
      %v607 = vadd.f32 %v587, %v594
      %v608 = vadd.f32 %v588, %v594
      %v609 = vadd.f32 %v589, %v594
      %v610 = vadd.f32 %v590, %v594
      %v611 = vadd.f32 %v591, %v594
      %v612 = vsub.f32 0.0, %v596
      %v613 = vsub.f32 0.0, %v597
      %v614 = vsub.f32 0.0, %v598
      %v615 = vsub.f32 0.0, %v599
      %v616 = vsub.f32 0.0, %v600
      %v617 = vsub.f32 0.0, %v601
      %v618 = vsub.f32 0.0, %v602
      %v619 = vsub.f32 0.0, %v603
      %v620 = vsub.f32 0.0, %v604
      %v621 = vsub.f32 0.0, %v605
      %v622 = vsub.f32 0.0, %v606
      %v623 = vsub.f32 0.0, %v607
      %v624 = vsub.f32 0.0, %v608
      %v625 = vsub.f32 0.0, %v609
      %v626 = vsub.f32 0.0, %v610
      %v627 = vsub.f32 0.0, %v611
      %v628 = vmul.f32 %v612, 1.442695
      %v629 = vpow.pop %v628
      %v630 = vmul.f32 %v613, 1.442695
      %v631 = vpow.pop %v630
      %v632 = vmul.f32 %v614, 1.442695
      %v633 = vpow.pop %v632
      %v634 = vmul.f32 %v615, 1.442695
      %v635 = vpow.pop %v634
      %v636 = vmul.f32 %v616, 1.442695
      %v637 = vpow.pop %v636
      %v638 = vmul.f32 %v617, 1.442695
      %v639 = vpow.pop %v638
      %v640 = vmul.f32 %v618, 1.442695
      %v641 = vpow.pop %v640
      %v642 = vmul.f32 %v619, 1.442695
      %v643 = vpow.pop %v642
      %v644 = vmul.f32 %v620, 1.442695
      %v645 = vpow.pop %v644
      %v646 = vmul.f32 %v621, 1.442695
      %v647 = vpow.pop %v646
      %v648 = vmul.f32 %v622, 1.442695
      %v649 = vpow.pop %v648
      %v650 = vmul.f32 %v623, 1.442695
      %v651 = vpow.pop %v650
      %v652 = vmul.f32 %v624, 1.442695
      %v653 = vpow.pop %v652
      %v654 = vmul.f32 %v625, 1.442695
      %v655 = vpow.pop %v654
      %v656 = vmul.f32 %v626, 1.442695
      %v657 = vpow.pop %v656
      %v658 = vmul.f32 %v627, 1.442695
      %v659 = vpow.pop %v658
      %v660 = vadd.f32 %v629, 1.0
      %v661 = vadd.f32 %v631, 1.0
      %v662 = vadd.f32 %v633, 1.0
      %v663 = vadd.f32 %v635, 1.0
      %v664 = vadd.f32 %v637, 1.0
      %v665 = vadd.f32 %v639, 1.0
      %v666 = vadd.f32 %v641, 1.0
      %v667 = vadd.f32 %v643, 1.0
      %v668 = vadd.f32 %v645, 1.0
      %v669 = vadd.f32 %v647, 1.0
      %v670 = vadd.f32 %v649, 1.0
      %v671 = vadd.f32 %v651, 1.0
      %v672 = vadd.f32 %v653, 1.0
      %v673 = vadd.f32 %v655, 1.0
      %v674 = vadd.f32 %v657, 1.0
      %v675 = vadd.f32 %v659, 1.0
      %v676 = vrcp.pop %v660
      %v677 = vmul.f32 %v660, %v676
      %v678 = vsub.f32 1.0, %v677
      %v679 = vmul.f32 %v676, %v678
      %v680 = vadd.f32 %v676, %v679
      %vm681 = vweird.f32 %v660
      %vm682 = vweird.f32 %v676
      %vm683 = vmor %vm681, %vm682
      %v684 = vsel %vm683, %v676, %v680
      %v685 = vand.u32 2147483647, %v660
      %vm686 = vcmp.eq.f32.partialorder %v685, 8.507059e+37
      %v687 = vand.u32 %v660, 2147483648
      %v688 = vor.u32 1.1754944e-38, %v687
      %v689 = vsel %vm686, %v688, %v684
      %v690 = vmul.f32 1.0, %v689
      %v691 = vrcp.pop %v661
      %v692 = vmul.f32 %v661, %v691
      %v693 = vsub.f32 1.0, %v692
      %v694 = vmul.f32 %v691, %v693
      %v695 = vadd.f32 %v691, %v694
      %vm696 = vweird.f32 %v661
      %vm697 = vweird.f32 %v691
      %vm698 = vmor %vm696, %vm697
      %v699 = vsel %vm698, %v691, %v695
      %v700 = vand.u32 2147483647, %v661
      %vm701 = vcmp.eq.f32.partialorder %v700, 8.507059e+37
      %v702 = vand.u32 %v661, 2147483648
      %v703 = vor.u32 1.1754944e-38, %v702
      %v704 = vsel %vm701, %v703, %v699
      %v705 = vmul.f32 1.0, %v704
      %v706 = vrcp.pop %v662
      %v707 = vmul.f32 %v662, %v706
      %v708 = vsub.f32 1.0, %v707
      %v709 = vmul.f32 %v706, %v708
      %v710 = vadd.f32 %v706, %v709
      %vm711 = vweird.f32 %v662
      %vm712 = vweird.f32 %v706
      %vm713 = vmor %vm711, %vm712
      %v714 = vsel %vm713, %v706, %v710
      %v715 = vand.u32 2147483647, %v662
      %vm716 = vcmp.eq.f32.partialorder %v715, 8.507059e+37
      %v717 = vand.u32 %v662, 2147483648
      %v718 = vor.u32 1.1754944e-38, %v717
      %v719 = vsel %vm716, %v718, %v714
      %v720 = vmul.f32 1.0, %v719
      %v721 = vrcp.pop %v663
      %v722 = vmul.f32 %v663, %v721
      %v723 = vsub.f32 1.0, %v722
      %v724 = vmul.f32 %v721, %v723
      %v725 = vadd.f32 %v721, %v724
      %vm726 = vweird.f32 %v663
      %vm727 = vweird.f32 %v721
      %vm728 = vmor %vm726, %vm727
      %v729 = vsel %vm728, %v721, %v725
      %v730 = vand.u32 2147483647, %v663
      %vm731 = vcmp.eq.f32.partialorder %v730, 8.507059e+37
      %v732 = vand.u32 %v663, 2147483648
      %v733 = vor.u32 1.1754944e-38, %v732
      %v734 = vsel %vm731, %v733, %v729
      %v735 = vmul.f32 1.0, %v734
      %v736 = vrcp.pop %v664
      %v737 = vmul.f32 %v664, %v736
      %v738 = vsub.f32 1.0, %v737
      %v739 = vmul.f32 %v736, %v738
      %v740 = vadd.f32 %v736, %v739
      %vm741 = vweird.f32 %v664
      %vm742 = vweird.f32 %v736
      %vm743 = vmor %vm741, %vm742
      %v744 = vsel %vm743, %v736, %v740
      %v745 = vand.u32 2147483647, %v664
      %vm746 = vcmp.eq.f32.partialorder %v745, 8.507059e+37
      %v747 = vand.u32 %v664, 2147483648
      %v748 = vor.u32 1.1754944e-38, %v747
      %v749 = vsel %vm746, %v748, %v744
      %v750 = vmul.f32 1.0, %v749
      %v751 = vrcp.pop %v665
      %v752 = vmul.f32 %v665, %v751
      %v753 = vsub.f32 1.0, %v752
      %v754 = vmul.f32 %v751, %v753
      %v755 = vadd.f32 %v751, %v754
      %vm756 = vweird.f32 %v665
      %vm757 = vweird.f32 %v751
      %vm758 = vmor %vm756, %vm757
      %v759 = vsel %vm758, %v751, %v755
      %v760 = vand.u32 2147483647, %v665
      %vm761 = vcmp.eq.f32.partialorder %v760, 8.507059e+37
      %v762 = vand.u32 %v665, 2147483648
      %v763 = vor.u32 1.1754944e-38, %v762
      %v764 = vsel %vm761, %v763, %v759
      %v765 = vmul.f32 1.0, %v764
      %v766 = vrcp.pop %v666
      %v767 = vmul.f32 %v666, %v766
      %v768 = vsub.f32 1.0, %v767
      %v769 = vmul.f32 %v766, %v768
      %v770 = vadd.f32 %v766, %v769
      %vm771 = vweird.f32 %v666
      %vm772 = vweird.f32 %v766
      %vm773 = vmor %vm771, %vm772
      %v774 = vsel %vm773, %v766, %v770
      %v775 = vand.u32 2147483647, %v666
      %vm776 = vcmp.eq.f32.partialorder %v775, 8.507059e+37
      %v777 = vand.u32 %v666, 2147483648
      %v778 = vor.u32 1.1754944e-38, %v777
      %v779 = vsel %vm776, %v778, %v774
      %v780 = vmul.f32 1.0, %v779
      %v781 = vrcp.pop %v667
      %v782 = vmul.f32 %v667, %v781
      %v783 = vsub.f32 1.0, %v782
      %v784 = vmul.f32 %v781, %v783
      %v785 = vadd.f32 %v781, %v784
      %vm786 = vweird.f32 %v667
      %vm787 = vweird.f32 %v781
      %vm788 = vmor %vm786, %vm787
      %v789 = vsel %vm788, %v781, %v785
      %v790 = vand.u32 2147483647, %v667
      %vm791 = vcmp.eq.f32.partialorder %v790, 8.507059e+37
      %v792 = vand.u32 %v667, 2147483648
      %v793 = vor.u32 1.1754944e-38, %v792
      %v794 = vsel %vm791, %v793, %v789
      %v795 = vmul.f32 1.0, %v794
      %v796 = vrcp.pop %v668
      %v797 = vmul.f32 %v668, %v796
      %v798 = vsub.f32 1.0, %v797
      %v799 = vmul.f32 %v796, %v798
      %v800 = vadd.f32 %v796, %v799
      %vm801 = vweird.f32 %v668
      %vm802 = vweird.f32 %v796
      %vm803 = vmor %vm801, %vm802
      %v804 = vsel %vm803, %v796, %v800
      %v805 = vand.u32 2147483647, %v668
      %vm806 = vcmp.eq.f32.partialorder %v805, 8.507059e+37
      %v807 = vand.u32 %v668, 2147483648
      %v808 = vor.u32 1.1754944e-38, %v807
      %v809 = vsel %vm806, %v808, %v804
      %v810 = vmul.f32 1.0, %v809
      %v811 = vrcp.pop %v669
      %v812 = vmul.f32 %v669, %v811
      %v813 = vsub.f32 1.0, %v812
      %v814 = vmul.f32 %v811, %v813
      %v815 = vadd.f32 %v811, %v814
      %vm816 = vweird.f32 %v669
      %vm817 = vweird.f32 %v811
      %vm818 = vmor %vm816, %vm817
      %v819 = vsel %vm818, %v811, %v815
      %v820 = vand.u32 2147483647, %v669
      %vm821 = vcmp.eq.f32.partialorder %v820, 8.507059e+37
      %v822 = vand.u32 %v669, 2147483648
      %v823 = vor.u32 1.1754944e-38, %v822
      %v824 = vsel %vm821, %v823, %v819
      %v825 = vmul.f32 1.0, %v824
      %v826 = vrcp.pop %v670
      %v827 = vmul.f32 %v670, %v826
      %v828 = vsub.f32 1.0, %v827
      %v829 = vmul.f32 %v826, %v828
      %v830 = vadd.f32 %v826, %v829
      %vm831 = vweird.f32 %v670
      %vm832 = vweird.f32 %v826
      %vm833 = vmor %vm831, %vm832
      %v834 = vsel %vm833, %v826, %v830
      %v835 = vand.u32 2147483647, %v670
      %vm836 = vcmp.eq.f32.partialorder %v835, 8.507059e+37
      %v837 = vand.u32 %v670, 2147483648
      %v838 = vor.u32 1.1754944e-38, %v837
      %v839 = vsel %vm836, %v838, %v834
      %v840 = vmul.f32 1.0, %v839
      %v841 = vrcp.pop %v671
      %v842 = vmul.f32 %v671, %v841
      %v843 = vsub.f32 1.0, %v842
      %v844 = vmul.f32 %v841, %v843
      %v845 = vadd.f32 %v841, %v844
      %vm846 = vweird.f32 %v671
      %vm847 = vweird.f32 %v841
      %vm848 = vmor %vm846, %vm847
      %v849 = vsel %vm848, %v841, %v845
      %v850 = vand.u32 2147483647, %v671
      %vm851 = vcmp.eq.f32.partialorder %v850, 8.507059e+37
      %v852 = vand.u32 %v671, 2147483648
      %v853 = vor.u32 1.1754944e-38, %v852
      %v854 = vsel %vm851, %v853, %v849
      %v855 = vmul.f32 1.0, %v854
      %v856 = vrcp.pop %v672
      %v857 = vmul.f32 %v672, %v856
      %v858 = vsub.f32 1.0, %v857
      %v859 = vmul.f32 %v856, %v858
      %v860 = vadd.f32 %v856, %v859
      %vm861 = vweird.f32 %v672
      %vm862 = vweird.f32 %v856
      %vm863 = vmor %vm861, %vm862
      %v864 = vsel %vm863, %v856, %v860
      %v865 = vand.u32 2147483647, %v672
      %vm866 = vcmp.eq.f32.partialorder %v865, 8.507059e+37
      %v867 = vand.u32 %v672, 2147483648
      %v868 = vor.u32 1.1754944e-38, %v867
      %v869 = vsel %vm866, %v868, %v864
      %v870 = vmul.f32 1.0, %v869
      %v871 = vrcp.pop %v673
      %v872 = vmul.f32 %v673, %v871
      %v873 = vsub.f32 1.0, %v872
      %v874 = vmul.f32 %v871, %v873
      %v875 = vadd.f32 %v871, %v874
      %vm876 = vweird.f32 %v673
      %vm877 = vweird.f32 %v871
      %vm878 = vmor %vm876, %vm877
      %v879 = vsel %vm878, %v871, %v875
      %v880 = vand.u32 2147483647, %v673
      %vm881 = vcmp.eq.f32.partialorder %v880, 8.507059e+37
      %v882 = vand.u32 %v673, 2147483648
      %v883 = vor.u32 1.1754944e-38, %v882
      %v884 = vsel %vm881, %v883, %v879
      %v885 = vmul.f32 1.0, %v884
      %v886 = vrcp.pop %v674
      %v887 = vmul.f32 %v674, %v886
      %v888 = vsub.f32 1.0, %v887
      %v889 = vmul.f32 %v886, %v888
      %v890 = vadd.f32 %v886, %v889
      %vm891 = vweird.f32 %v674
      %vm892 = vweird.f32 %v886
      %vm893 = vmor %vm891, %vm892
      %v894 = vsel %vm893, %v886, %v890
      %v895 = vand.u32 2147483647, %v674
      %vm896 = vcmp.eq.f32.partialorder %v895, 8.507059e+37
      %v897 = vand.u32 %v674, 2147483648
      %v898 = vor.u32 1.1754944e-38, %v897
      %v899 = vsel %vm896, %v898, %v894
      %v900 = vmul.f32 1.0, %v899
      %v901 = vrcp.pop %v675
      %v902 = vmul.f32 %v675, %v901
      %v903 = vsub.f32 1.0, %v902
      %v904 = vmul.f32 %v901, %v903
      %v905 = vadd.f32 %v901, %v904
      %vm906 = vweird.f32 %v675
      %vm907 = vweird.f32 %v901
      %vm908 = vmor %vm906, %vm907
      %v909 = vsel %vm908, %v901, %v905
      %v910 = vand.u32 2147483647, %v675
      %vm911 = vcmp.eq.f32.partialorder %v910, 8.507059e+37
      %v912 = vand.u32 %v675, 2147483648
      %v913 = vor.u32 1.1754944e-38, %v912
      %v914 = vsel %vm911, %v913, %v909
      %v915 = vmul.f32 1.0, %v914
      %v916 = vld [vmem:[%s5] sm:$0x1]
      %v918 = vperm.slane %v916, 0
      %919 = vrot.lane.b32.xlu0 %v918, 64
      %v920 = vpop.permute.xlu0 %919
      %v922 = vadd.f32 %v415, %v920
      %v923 = vadd.f32 %v418, %v920
      %v924 = vadd.f32 %v421, %v920
      %v925 = vadd.f32 %v424, %v920
      %v926 = vadd.f32 %v427, %v920
      %v927 = vadd.f32 %v430, %v920
      %v928 = vadd.f32 %v433, %v920
      %v929 = vadd.f32 %v436, %v920
      %v930 = vadd.f32 %v439, %v920
      %v931 = vadd.f32 %v442, %v920
      %v932 = vadd.f32 %v445, %v920
      %v933 = vadd.f32 %v448, %v920
      %v934 = vadd.f32 %v451, %v920
      %v935 = vadd.f32 %v454, %v920
      %v936 = vadd.f32 %v457, %v920
      %v937 = vadd.f32 %v460, %v920
      %v938 = vld [vmem:[%s6] sm:$0x1]
      %v940 = vperm.slane %v938, 0
      %941 = vrot.lane.b32.xlu0 %v940, 64
      %v942 = vpop.permute.xlu0 %941
      %v944 = vadd.f32 %v529, %v942
      %v945 = vadd.f32 %v532, %v942
      %v946 = vadd.f32 %v535, %v942
      %v947 = vadd.f32 %v538, %v942
      %v948 = vadd.f32 %v541, %v942
      %v949 = vadd.f32 %v544, %v942
      %v950 = vadd.f32 %v547, %v942
      %v951 = vadd.f32 %v550, %v942
      %v952 = vadd.f32 %v553, %v942
      %v953 = vadd.f32 %v556, %v942
      %v954 = vadd.f32 %v559, %v942
      %v955 = vadd.f32 %v562, %v942
      %v956 = vadd.f32 %v565, %v942
      %v957 = vadd.f32 %v568, %v942
      %v958 = vadd.f32 %v571, %v942
      %v959 = vadd.f32 %v574, %v942
      %976 = vrot.lane.b32.xlu0 %v944, 64
      %v977 = vpop.permute.xlu0 %976
      %978 = vrot.lane.b32.xlu0 %v945, 64
      %v979 = vpop.permute.xlu0 %978
      %980 = vrot.lane.b32.xlu0 %v946, 64
      %v981 = vpop.permute.xlu0 %980
      %982 = vrot.lane.b32.xlu0 %v947, 64
      %v983 = vpop.permute.xlu0 %982
      %984 = vrot.lane.b32.xlu0 %v948, 64
      %v985 = vpop.permute.xlu0 %984
      %986 = vrot.lane.b32.xlu0 %v949, 64
      %v987 = vpop.permute.xlu0 %986
      %988 = vrot.lane.b32.xlu0 %v950, 64
      %v989 = vpop.permute.xlu0 %988
      %990 = vrot.lane.b32.xlu0 %v951, 64
      %v991 = vpop.permute.xlu0 %990
      %992 = vrot.lane.b32.xlu0 %v952, 64
      %v993 = vpop.permute.xlu0 %992
      %994 = vrot.lane.b32.xlu0 %v953, 64
      %v995 = vpop.permute.xlu0 %994
      %996 = vrot.lane.b32.xlu0 %v954, 64
      %v997 = vpop.permute.xlu0 %996
      %998 = vrot.lane.b32.xlu0 %v955, 64
      %v999 = vpop.permute.xlu0 %998
      %1000 = vrot.lane.b32.xlu0 %v956, 64
      %v1001 = vpop.permute.xlu0 %1000
      %1002 = vrot.lane.b32.xlu0 %v957, 64
      %v1003 = vpop.permute.xlu0 %1002
      %1004 = vrot.lane.b32.xlu0 %v958, 64
      %v1005 = vpop.permute.xlu0 %1004
      %1006 = vrot.lane.b32.xlu0 %v959, 64
      %v1007 = vpop.permute.xlu0 %1006
      %v1024 = vmul.f32 %v690, %v977
      %v1025 = vmul.f32 %v705, %v979
      %v1026 = vmul.f32 %v720, %v981
      %v1027 = vmul.f32 %v735, %v983
      %v1028 = vmul.f32 %v750, %v985
      %v1029 = vmul.f32 %v765, %v987
      %v1030 = vmul.f32 %v780, %v989
      %v1031 = vmul.f32 %v795, %v991
      %v1032 = vmul.f32 %v810, %v993
      %v1033 = vmul.f32 %v825, %v995
      %v1034 = vmul.f32 %v840, %v997
      %v1035 = vmul.f32 %v855, %v999
      %v1036 = vmul.f32 %v870, %v1001
      %v1037 = vmul.f32 %v885, %v1003
      %v1038 = vmul.f32 %v900, %v1005
      %v1039 = vmul.f32 %v915, %v1007
      %1056 = vrot.lane.b32.xlu0 %v1024, 64
      %v1057 = vpop.permute.xlu0 %1056
      %1058 = vrot.lane.b32.xlu0 %v1025, 64
      %v1059 = vpop.permute.xlu0 %1058
      %1060 = vrot.lane.b32.xlu0 %v1026, 64
      %v1061 = vpop.permute.xlu0 %1060
      %1062 = vrot.lane.b32.xlu0 %v1027, 64
      %v1063 = vpop.permute.xlu0 %1062
      %1064 = vrot.lane.b32.xlu0 %v1028, 64
      %v1065 = vpop.permute.xlu0 %1064
      %1066 = vrot.lane.b32.xlu0 %v1029, 64
      %v1067 = vpop.permute.xlu0 %1066
      %1068 = vrot.lane.b32.xlu0 %v1030, 64
      %v1069 = vpop.permute.xlu0 %1068
      %1070 = vrot.lane.b32.xlu0 %v1031, 64
      %v1071 = vpop.permute.xlu0 %1070
      %1072 = vrot.lane.b32.xlu0 %v1032, 64
      %v1073 = vpop.permute.xlu0 %1072
      %1074 = vrot.lane.b32.xlu0 %v1033, 64
      %v1075 = vpop.permute.xlu0 %1074
      %1076 = vrot.lane.b32.xlu0 %v1034, 64
      %v1077 = vpop.permute.xlu0 %1076
      %1078 = vrot.lane.b32.xlu0 %v1035, 64
      %v1079 = vpop.permute.xlu0 %1078
      %1080 = vrot.lane.b32.xlu0 %v1036, 64
      %v1081 = vpop.permute.xlu0 %1080
      %1082 = vrot.lane.b32.xlu0 %v1037, 64
      %v1083 = vpop.permute.xlu0 %1082
      %1084 = vrot.lane.b32.xlu0 %v1038, 64
      %v1085 = vpop.permute.xlu0 %1084
      %1086 = vrot.lane.b32.xlu0 %v1039, 64
      %v1087 = vpop.permute.xlu0 %1086
      %v1104 = vadd.f32 %v922, %v1057
      %v1105 = vadd.f32 %v923, %v1059
      %v1106 = vadd.f32 %v924, %v1061
      %v1107 = vadd.f32 %v925, %v1063
      %v1108 = vadd.f32 %v926, %v1065
      %v1109 = vadd.f32 %v927, %v1067
      %v1110 = vadd.f32 %v928, %v1069
      %v1111 = vadd.f32 %v929, %v1071
      %v1112 = vadd.f32 %v930, %v1073
      %v1113 = vadd.f32 %v931, %v1075
      %v1114 = vadd.f32 %v932, %v1077
      %v1115 = vadd.f32 %v933, %v1079
      %v1116 = vadd.f32 %v934, %v1081
      %v1117 = vadd.f32 %v935, %v1083
      %v1118 = vadd.f32 %v936, %v1085
      %v1119 = vadd.f32 %v937, %v1087
      %v1120 = vtanh.pop %v1104
      %v1121 = vtanh.pop %v1105
      %v1122 = vtanh.pop %v1106
      %v1123 = vtanh.pop %v1107
      %v1124 = vtanh.pop %v1108
      %v1125 = vtanh.pop %v1109
      %v1126 = vtanh.pop %v1110
      %v1127 = vtanh.pop %v1111
      %v1128 = vtanh.pop %v1112
      %v1129 = vtanh.pop %v1113
      %v1130 = vtanh.pop %v1114
      %v1131 = vtanh.pop %v1115
      %v1132 = vtanh.pop %v1116
      %v1133 = vtanh.pop %v1117
      %v1134 = vtanh.pop %v1118
      %v1135 = vtanh.pop %v1119
      %v1136 = vsub.f32 1.0, %v690
      %v1137 = vsub.f32 1.0, %v705
      %v1138 = vsub.f32 1.0, %v720
      %v1139 = vsub.f32 1.0, %v735
      %v1140 = vsub.f32 1.0, %v750
      %v1141 = vsub.f32 1.0, %v765
      %v1142 = vsub.f32 1.0, %v780
      %v1143 = vsub.f32 1.0, %v795
      %v1144 = vsub.f32 1.0, %v810
      %v1145 = vsub.f32 1.0, %v825
      %v1146 = vsub.f32 1.0, %v840
      %v1147 = vsub.f32 1.0, %v855
      %v1148 = vsub.f32 1.0, %v870
      %v1149 = vsub.f32 1.0, %v885
      %v1150 = vsub.f32 1.0, %v900
      %v1151 = vsub.f32 1.0, %v915
      %1168 = vrot.lane.b32.xlu0 %v1120, 96
      %v1169 = vpop.permute.xlu0 %1168
      %1170 = vrot.lane.b32.xlu0 %v1121, 96
      %v1171 = vpop.permute.xlu0 %1170
      %1172 = vrot.lane.b32.xlu0 %v1122, 96
      %v1173 = vpop.permute.xlu0 %1172
      %1174 = vrot.lane.b32.xlu0 %v1123, 96
      %v1175 = vpop.permute.xlu0 %1174
      %1176 = vrot.lane.b32.xlu0 %v1124, 96
      %v1177 = vpop.permute.xlu0 %1176
      %1178 = vrot.lane.b32.xlu0 %v1125, 96
      %v1179 = vpop.permute.xlu0 %1178
      %1180 = vrot.lane.b32.xlu0 %v1126, 96
      %v1181 = vpop.permute.xlu0 %1180
      %1182 = vrot.lane.b32.xlu0 %v1127, 96
      %v1183 = vpop.permute.xlu0 %1182
      %1184 = vrot.lane.b32.xlu0 %v1128, 96
      %v1185 = vpop.permute.xlu0 %1184
      %1186 = vrot.lane.b32.xlu0 %v1129, 96
      %v1187 = vpop.permute.xlu0 %1186
      %1188 = vrot.lane.b32.xlu0 %v1130, 96
      %v1189 = vpop.permute.xlu0 %1188
      %1190 = vrot.lane.b32.xlu0 %v1131, 96
      %v1191 = vpop.permute.xlu0 %1190
      %1192 = vrot.lane.b32.xlu0 %v1132, 96
      %v1193 = vpop.permute.xlu0 %1192
      %1194 = vrot.lane.b32.xlu0 %v1133, 96
      %v1195 = vpop.permute.xlu0 %1194
      %1196 = vrot.lane.b32.xlu0 %v1134, 96
      %v1197 = vpop.permute.xlu0 %1196
      %1198 = vrot.lane.b32.xlu0 %v1135, 96
      %v1199 = vpop.permute.xlu0 %1198
      %v1216 = vmul.f32 %v1136, %v1169
      %v1217 = vmul.f32 %v1137, %v1171
      %v1218 = vmul.f32 %v1138, %v1173
      %v1219 = vmul.f32 %v1139, %v1175
      %v1220 = vmul.f32 %v1140, %v1177
      %v1221 = vmul.f32 %v1141, %v1179
      %v1222 = vmul.f32 %v1142, %v1181
      %v1223 = vmul.f32 %v1143, %v1183
      %v1224 = vmul.f32 %v1144, %v1185
      %v1225 = vmul.f32 %v1145, %v1187
      %v1226 = vmul.f32 %v1146, %v1189
      %v1227 = vmul.f32 %v1147, %v1191
      %v1228 = vmul.f32 %v1148, %v1193
      %v1229 = vmul.f32 %v1149, %v1195
      %v1230 = vmul.f32 %v1150, %v1197
      %v1231 = vmul.f32 %v1151, %v1199
      %1232 = vrot.lane.b32.xlu0 %v320, 32
      %v1233 = vpop.permute.xlu0 %1232
      %1234 = vrot.lane.b32.xlu0 %v321, 32
      %v1235 = vpop.permute.xlu0 %1234
      %1236 = vrot.lane.b32.xlu0 %v322, 32
      %v1237 = vpop.permute.xlu0 %1236
      %1238 = vrot.lane.b32.xlu0 %v323, 32
      %v1239 = vpop.permute.xlu0 %1238
      %1240 = vrot.lane.b32.xlu0 %v324, 32
      %v1241 = vpop.permute.xlu0 %1240
      %1242 = vrot.lane.b32.xlu0 %v325, 32
      %v1243 = vpop.permute.xlu0 %1242
      %1244 = vrot.lane.b32.xlu0 %v326, 32
      %v1245 = vpop.permute.xlu0 %1244
      %1246 = vrot.lane.b32.xlu0 %v327, 32
      %v1247 = vpop.permute.xlu0 %1246
      %1248 = vrot.lane.b32.xlu0 %v328, 32
      %v1249 = vpop.permute.xlu0 %1248
      %1250 = vrot.lane.b32.xlu0 %v329, 32
      %v1251 = vpop.permute.xlu0 %1250
      %1252 = vrot.lane.b32.xlu0 %v330, 32
      %v1253 = vpop.permute.xlu0 %1252
      %1254 = vrot.lane.b32.xlu0 %v331, 32
      %v1255 = vpop.permute.xlu0 %1254
      %1256 = vrot.lane.b32.xlu0 %v332, 32
      %v1257 = vpop.permute.xlu0 %1256
      %1258 = vrot.lane.b32.xlu0 %v333, 32
      %v1259 = vpop.permute.xlu0 %1258
      %1260 = vrot.lane.b32.xlu0 %v334, 32
      %v1261 = vpop.permute.xlu0 %1260
      %1262 = vrot.lane.b32.xlu0 %v335, 32
      %v1263 = vpop.permute.xlu0 %1262
      %v1280 = vmul.f32 %v690, %v1233
      %v1281 = vmul.f32 %v705, %v1235
      %v1282 = vmul.f32 %v720, %v1237
      %v1283 = vmul.f32 %v735, %v1239
      %v1284 = vmul.f32 %v750, %v1241
      %v1285 = vmul.f32 %v765, %v1243
      %v1286 = vmul.f32 %v780, %v1245
      %v1287 = vmul.f32 %v795, %v1247
      %v1288 = vmul.f32 %v810, %v1249
      %v1289 = vmul.f32 %v825, %v1251
      %v1290 = vmul.f32 %v840, %v1253
      %v1291 = vmul.f32 %v855, %v1255
      %v1292 = vmul.f32 %v870, %v1257
      %v1293 = vmul.f32 %v885, %v1259
      %v1294 = vmul.f32 %v900, %v1261
      %v1295 = vmul.f32 %v915, %v1263
      %v1296 = vadd.f32 %v1216, %v1280
      %v1297 = vadd.f32 %v1217, %v1281
      %v1298 = vadd.f32 %v1218, %v1282
      %v1299 = vadd.f32 %v1219, %v1283
      %v1300 = vadd.f32 %v1220, %v1284
      %v1301 = vadd.f32 %v1221, %v1285
      %v1302 = vadd.f32 %v1222, %v1286
      %v1303 = vadd.f32 %v1223, %v1287
      %v1304 = vadd.f32 %v1224, %v1288
      %v1305 = vadd.f32 %v1225, %v1289
      %v1306 = vadd.f32 %v1226, %v1290
      %v1307 = vadd.f32 %v1227, %v1291
      %v1308 = vadd.f32 %v1228, %v1292
      %v1309 = vadd.f32 %v1229, %v1293
      %v1310 = vadd.f32 %v1230, %v1294
      %v1311 = vadd.f32 %v1231, %v1295
      %1328 = vrot.lane.b32.xlu0 %v1296, 96
      %v1329 = vpop.permute.xlu0 %1328
      %1330 = vrot.lane.b32.xlu0 %v1297, 96
      %v1331 = vpop.permute.xlu0 %1330
      %1332 = vrot.lane.b32.xlu0 %v1298, 96
      %v1333 = vpop.permute.xlu0 %1332
      %1334 = vrot.lane.b32.xlu0 %v1299, 96
      %v1335 = vpop.permute.xlu0 %1334
      %1336 = vrot.lane.b32.xlu0 %v1300, 96
      %v1337 = vpop.permute.xlu0 %1336
      %1338 = vrot.lane.b32.xlu0 %v1301, 96
      %v1339 = vpop.permute.xlu0 %1338
      %1340 = vrot.lane.b32.xlu0 %v1302, 96
      %v1341 = vpop.permute.xlu0 %1340
      %1342 = vrot.lane.b32.xlu0 %v1303, 96
      %v1343 = vpop.permute.xlu0 %1342
      %1344 = vrot.lane.b32.xlu0 %v1304, 96
      %v1345 = vpop.permute.xlu0 %1344
      %1346 = vrot.lane.b32.xlu0 %v1305, 96
      %v1347 = vpop.permute.xlu0 %1346
      %1348 = vrot.lane.b32.xlu0 %v1306, 96
      %v1349 = vpop.permute.xlu0 %1348
      %1350 = vrot.lane.b32.xlu0 %v1307, 96
      %v1351 = vpop.permute.xlu0 %1350
      %1352 = vrot.lane.b32.xlu0 %v1308, 96
      %v1353 = vpop.permute.xlu0 %1352
      %1354 = vrot.lane.b32.xlu0 %v1309, 96
      %v1355 = vpop.permute.xlu0 %1354
      %1356 = vrot.lane.b32.xlu0 %v1310, 96
      %v1357 = vpop.permute.xlu0 %1356
      %1358 = vrot.lane.b32.xlu0 %v1311, 96
      %v1359 = vpop.permute.xlu0 %1358
      %1376 = vst.msk [vmem:[%s302] sm:$0xff] %vm462, %v1329
      %1377 = vst.msk [vmem:[%s302 + $0x8] sm:$0xff] %vm462, %v1331
      %1378 = vst.msk [vmem:[%s302 + $0x10] sm:$0xff] %vm462, %v1333
      %1379 = vst.msk [vmem:[%s302 + $0x18] sm:$0xff] %vm462, %v1335
      %1380 = vst.msk [vmem:[%s302 + $0x20] sm:$0xff] %vm462, %v1337
      %1381 = vst.msk [vmem:[%s302 + $0x28] sm:$0xff] %vm462, %v1339
      %1382 = vst.msk [vmem:[%s302 + $0x30] sm:$0xff] %vm462, %v1341
      %1383 = vst.msk [vmem:[%s302 + $0x38] sm:$0xff] %vm462, %v1343
      %1384 = vst.msk [vmem:[%s302 + $0x40] sm:$0xff] %vm462, %v1345
      %1385 = vst.msk [vmem:[%s302 + $0x48] sm:$0xff] %vm462, %v1347
      %1386 = vst.msk [vmem:[%s302 + $0x50] sm:$0xff] %vm462, %v1349
      %1387 = vst.msk [vmem:[%s302 + $0x58] sm:$0xff] %vm462, %v1351
      %1388 = vst.msk [vmem:[%s302 + $0x60] sm:$0xff] %vm462, %v1353
      %1389 = vst.msk [vmem:[%s302 + $0x68] sm:$0xff] %vm462, %v1355
      %1390 = vst.msk [vmem:[%s302 + $0x70] sm:$0xff] %vm462, %v1357
      %1391 = vst.msk [vmem:[%s302 + $0x78] sm:$0xff] %vm462, %v1359
      %s1392 = smul.u32 16, %s18
      %p1393 = scmp.lt.s32.totalorder %s1392, 31
      %s1394 = scalar_select %p1393, %s1392, 31
      %s1395 = smul.addr %s1394, 8
      %s1396 = scalar_lea.vmem %s7, %s1395
      // Predicated region
      $region49: #{tpu_custom_call.1} parent=47 // pred_check
        %p1397 = pneg %p193
      $region50: #{tpu_custom_call.1} parent=47 // pred_check_branch
        %1399 = sbr.rel (%p1397) target = $region52
      $region51: #{tpu_custom_call.1} parent=47 // pred_region
        %s1400 = smul.u32 16, %s18
      $region52: #{tpu_custom_call.1} parent=47 // pred_fallthru
        _
    $region48: #{tpu_custom_call.1} parent=5 // pred_fallthru
      _
    %p1401 = scmp.le.s32.totalorder 2, %s13
    // Predicated region
    $region53: #{tpu_custom_call.1} parent=5 // pred_check
      %p1402 = pneg %p1401
    $region54: #{tpu_custom_call.1} parent=5 // pred_check_branch
      %1404 = sbr.rel (%p1402) target = $region56
    $region55: #{tpu_custom_call.1} parent=5 // pred_region
      %s1405 = ssub.s32 %s13, 2
      // Predicated region
      $region57: #{tpu_custom_call.1} parent=55 // pred_check
        %p1406 = pneg %p199
      $region58: #{tpu_custom_call.1} parent=55 // pred_check_branch
        %1408 = sbr.rel (%p1406) target = $region60
      $region59: #{tpu_custom_call.1} parent=55 // pred_region
        %s1409 = smul.u32 16, %s19
        %p1410 = scmp.lt.s32.totalorder %s1409, 31
        %s1411 = scalar_select %p1410, %s1409, 31
        %s1412 = smul.addr %s1411, 8
        %s1413 = scalar_lea.vmem %s7, %s1412
      $region60: #{tpu_custom_call.1} parent=55 // pred_fallthru
        _
    $region56: #{tpu_custom_call.1} parent=5 // pred_fallthru
      _
  $region6: #{tpu_custom_call.1} parent=0 // loop_footer
    %s17 = sadd.s32 1, %s13
  $region7: #{tpu_custom_call.1} parent=0 // loop_footer_branch
    %12 = sbr.rel target = $region3
  $region8: #{tpu_custom_call.1} parent=0 // loop_exit
    _

</llo_original>
